<compile_context>
chip_gen: v5e
topology: v5e:2x2
jax: 0.10.0
libtpu: 0.0.40
codegen_flags: <defaults>
</compile_context>

<pallas_src>
import functools

import jax
import jax.numpy as jnp
from jax.experimental import pallas as pl
from jax.experimental.pallas import tpu as pltpu


def _angle_loss_kernel(f1_ref, f2_ref, out_ref, *, eps, hw, tm, needs_mask):
    t = pl.program_id(2)  # position-tile axis (innermost, "arbitrary")

    @pl.when(t == 0)
    def _():
        out_ref[...] = jnp.zeros_like(out_ref)

    a = f1_ref[...].astype(jnp.float32)  # (C, TM)
    b = f2_ref[...].astype(jnp.float32)  # (C, TM)

    dot = jnp.sum(a * b, axis=0, keepdims=True)          # (1, TM)
    n1 = jnp.sqrt(jnp.sum(a * a, axis=0, keepdims=True))  # (1, TM)
    n2 = jnp.sqrt(jnp.sum(b * b, axis=0, keepdims=True))  # (1, TM)

    loss = 1.0 - dot / (n1 * n2 + eps)                    # (1, TM)

    if needs_mask:
        # Global tile index across the (P, T) split of the position axis.
        g = pl.program_id(1) * pl.num_programs(2) + t
        start = g * tm

        @pl.when(start + tm <= hw)
        def _():  # interior tile: no mask work at all
            out_ref[...] = out_ref[...] + loss

        @pl.when(start + tm > hw)
        def _():  # edge / overflow tile: zero out-of-range lanes AFTER the divide
            col = jax.lax.broadcasted_iota(jnp.int32, loss.shape, 1) + start
            out_ref[...] = out_ref[...] + jnp.where(col < hw, loss, 0.0)
    else:
        out_ref[...] = out_ref[...] + loss


def angle_loss(f1, f2, eps=1e-5):
    """f1, f2: (N, C, H, W) arrays.  Returns scalar mean(1 - cos)."""
    assert f1.shape == f2.shape
    N, C, H, W = f1.shape
    HW = H * W
    M = N * HW

    # Free (metadata-only) reshape: NCHW -> (N, C, HW).  No transpose, no copy.
    a = f1.reshape(N, C, HW)
    b = f2.reshape(N, C, HW)

    itemsize = a.dtype.itemsize
    sublane = 8 * max(4 // max(itemsize, 1), 1)        # f32 -> 8, bf16 -> 16
    c_sub = pl.cdiv(C, sublane) * sublane              # sublane-padded channel rows

    # VMEM bytes per lane of tile width:
    #   inputs : 2 arrays x 2 pipeline buffers x c_sub rows x itemsize
    #   temps  : ~5 f32 intermediates (a, b casts + 3 products) x c_sub x 4
    #   output : (1, tm) block, sublane-padded to 8 rows, double buffered
    bytes_per_lane = 2 * 2 * c_sub * itemsize + 5 * c_sub * 4 + 2 * 8 * 4

    try:
        vmem_cap = pltpu.get_tpu_info().vmem_capacity_bytes
    except Exception:
        vmem_cap = 64 * 1024 * 1024  # assume the tightest budget (v7x per-TC)

    if vmem_cap >= 100 * 1024 * 1024:   # v5e / v6e: 128 MiB -> go big
        budget = 48 * 1024 * 1024
        vmem_limit = 80 * 1024 * 1024
    else:                               # v7x: 64 MiB per TC -> stay well under
        budget = 24 * 1024 * 1024
        vmem_limit = 48 * 1024 * 1024

    tm_cap = budget // bytes_per_lane
    tm_cap = max(128, min(8192, (tm_cap // 128) * 128))
    tm = min(tm_cap, pl.cdiv(HW, 128) * 128)

    # Ragged last tile instead of padding the inputs.
    n_tiles = pl.cdiv(HW, tm)

    # Split position tiles into P parallel halves so both v7x TensorCores are
    # used even at batch 1 (harmless single extra axis on v5e/v6e).
    P = 2 if n_tiles >= 2 else 1
    T = pl.cdiv(n_tiles, P)
    overflow = P * T > n_tiles                 # an extra (fully masked) tile exists
    needs_mask = (HW % tm != 0) or overflow

    def in_index_map(n, p, t):
        g = p * T + t
        if overflow:
            g = jnp.minimum(g, n_tiles - 1)    # clamp; its columns are masked anyway
        return (n, 0, g)

    kernel = functools.partial(
        _angle_loss_kernel, eps=float(eps), hw=HW, tm=tm, needs_mask=needs_mask
    )

    partial_sums = pl.pallas_call(
        kernel,
        out_shape=jax.ShapeDtypeStruct((N, P, 1, tm), jnp.float32),
        grid_spec=pltpu.PrefetchScalarGridSpec(
            num_scalar_prefetch=0,
            grid=(N, P, T),
            in_specs=[
                pl.BlockSpec((None, C, tm), in_index_map),
                pl.BlockSpec((None, C, tm), in_index_map),
            ],
            # Lane-dense (1, tm) accumulator block per (image, half); revisited
            # across the tile axis -> stays VMEM-resident, written back once.
            out_specs=pl.BlockSpec((None, None, 1, tm), lambda n, p, t: (n, p, 0, 0)),
        ),
        compiler_params=pltpu.CompilerParams(
            dimension_semantics=("parallel", "parallel", "arbitrary"),
            vmem_limit_bytes=vmem_limit,
        ),
    )(a, b)

    # Tiny O(N*P*tm) epilogue reduction done by XLA.
    return jnp.sum(partial_sums) / jnp.float32(M)


def angle_loss_ref(f1, f2, eps=1e-5):
    f1 = f1.astype(jnp.float32)
    f2 = f2.astype(jnp.float32)
    f1xf2 = (f1 * f2).sum(axis=1)
    f1_ = jnp.sqrt((f1 ** 2).sum(axis=1))
    f2_ = jnp.sqrt((f2 ** 2).sum(axis=1))
    cos_angle = f1xf2 / (f1_ * f2_ + eps)
    return (1.0 - cos_angle).mean()


if __name__ == "__main__":
    key = jax.random.PRNGKey(0)
    k1, k2, k3, k4 = jax.random.split(key, 4)

    # Aligned case (H*W multiple of 128).
    N, C, H, W = 2, 4, 16, 16
    f1 = jax.random.normal(k1, (N, C, H, W), dtype=jnp.float32)
    f2 = jax.random.normal(k2, (N, C, H, W), dtype=jnp.float32)
    out = jax.block_until_ready(angle_loss(f1, f2))
    ref = angle_loss_ref(f1, f2)
    assert jnp.allclose(out, ref, atol=1e-5, rtol=1e-5), (out, ref)

    # Ragged case (H*W = 100, not a multiple of 128) exercises the masked edge
    # tile that replaced the jnp.pad copy.
    N2, C2, H2, W2 = 2, 4, 10, 10
    g1 = jax.random.normal(k3, (N2, C2, H2, W2), dtype=jnp.float32)
    g2 = jax.random.normal(k4, (N2, C2, H2, W2), dtype=jnp.float32)
    out2 = jax.block_until_ready(angle_loss(g1, g2))
    ref2 = angle_loss_ref(g1, g2)
    assert jnp.allclose(out2, ref2, atol=1e-5, rtol=1e-5), (out2, ref2)

    print("KERNEL_OK")
</pallas_src>

<mosaic_0001>
module attributes {stable_mosaic.version = 11 : i64} {
  func.func @_angle_loss_kernel(%arg0: i32, %arg1: i32, %arg2: i32, %arg3: memref<1x4x256xf32, #tpu.memory_space<vmem>>, %arg4: memref<1x4x256xf32, #tpu.memory_space<vmem>>, %arg5: memref<1x1x1x256xf32, #tpu.memory_space<vmem>>) attributes {dimension_semantics = [#tpu.dimension_semantics<parallel>, #tpu.dimension_semantics<parallel>, #tpu.dimension_semantics<arbitrary>], iteration_bounds = array<i64: 2, 1, 1>, scalar_prefetch = 0 : i64, scratch_operands = 0 : i64, tpu.core_type = #tpu.core_type<tc>, window_params = [{transform_indices = @transform_0, window_bounds = array<i64: 1, 4, 256>}, {transform_indices = @transform_1, window_bounds = array<i64: 1, 4, 256>}, {transform_indices = @transform_2, window_bounds = array<i64: 1, 1, 1, 256>}]} {
    %c0_i32 = arith.constant 0 : i32
    %0 = arith.cmpi eq, %arg2, %c0_i32 : i32
    %1 = arith.extui %0 : i1 to i32
    %c0_i32_0 = arith.constant 0 : i32
    %2 = arith.cmpi ne, %1, %c0_i32_0 : i32
    scf.if %2 {
      %cst_18 = arith.constant 0.000000e+00 : f32
      %30 = vector.broadcast %cst_18 : f32 to vector<1x256xf32>
      %c0_19 = arith.constant 0 : index
      %c0_20 = arith.constant 0 : index
      %c0_21 = arith.constant 0 : index
      %c0_22 = arith.constant 0 : index
      %31 = vector.load %arg5[%c0_19, %c0_20, %c0_21, %c0_22] : memref<1x1x1x256xf32, #tpu.memory_space<vmem>>, vector<1x1x1x256xf32>
      %32 = vector.shape_cast %31 : vector<1x1x1x256xf32> to vector<1x256xf32>
      %33 = vector.shape_cast %30 : vector<1x256xf32> to vector<1x1x1x256xf32>
      tpu.vector_store %arg5[%c0_19, %c0_20, %c0_21, %c0_22], %33 {strides = array<i32>} : memref<1x1x1x256xf32, #tpu.memory_space<vmem>>, vector<1x1x1x256xf32>,
    } else {
    }
    %c0 = arith.constant 0 : index
    %c0_1 = arith.constant 0 : index
    %c0_2 = arith.constant 0 : index
    %3 = vector.load %arg3[%c0, %c0_1, %c0_2] : memref<1x4x256xf32, #tpu.memory_space<vmem>>, vector<1x4x256xf32>
    %4 = vector.shape_cast %3 : vector<1x4x256xf32> to vector<4x256xf32>
    %c0_3 = arith.constant 0 : index
    %c0_4 = arith.constant 0 : index
    %c0_5 = arith.constant 0 : index
    %5 = vector.load %arg4[%c0_3, %c0_4, %c0_5] : memref<1x4x256xf32, #tpu.memory_space<vmem>>, vector<1x4x256xf32>
    %6 = vector.shape_cast %5 : vector<1x4x256xf32> to vector<4x256xf32>
    %7 = arith.mulf %4, %6 : vector<4x256xf32>
    %cst = arith.constant dense<0.000000e+00> : vector<256xf32>
    %8 = vector.multi_reduction <add>, %7, %cst [0] : vector<4x256xf32> to vector<256xf32>
    %9 = vector.shape_cast %8 : vector<256xf32> to vector<1x256xf32>
    %10 = arith.mulf %4, %4 : vector<4x256xf32>
    %cst_6 = arith.constant dense<0.000000e+00> : vector<256xf32>
    %11 = vector.multi_reduction <add>, %10, %cst_6 [0] : vector<4x256xf32> to vector<256xf32>
    %12 = vector.shape_cast %11 : vector<256xf32> to vector<1x256xf32>
    %13 = math.sqrt %12 : vector<1x256xf32>
    %14 = arith.mulf %6, %6 : vector<4x256xf32>
    %cst_7 = arith.constant dense<0.000000e+00> : vector<256xf32>
    %15 = vector.multi_reduction <add>, %14, %cst_7 [0] : vector<4x256xf32> to vector<256xf32>
    %16 = vector.shape_cast %15 : vector<256xf32> to vector<1x256xf32>
    %17 = math.sqrt %16 : vector<1x256xf32>
    %18 = arith.mulf %13, %17 : vector<1x256xf32>
    %cst_8 = arith.constant 9.99999974E-6 : f32
    %19 = vector.broadcast %cst_8 : f32 to vector<1x256xf32>
    %20 = arith.addf %18, %19 : vector<1x256xf32>
    %21 = arith.divf %9, %20 : vector<1x256xf32>
    %cst_9 = arith.constant 1.000000e+00 : f32
    %22 = vector.broadcast %cst_9 : f32 to vector<1x256xf32>
    %23 = arith.subf %22, %21 : vector<1x256xf32>
    %c0_10 = arith.constant 0 : index
    %c0_11 = arith.constant 0 : index
    %c0_12 = arith.constant 0 : index
    %c0_13 = arith.constant 0 : index
    %24 = vector.load %arg5[%c0_10, %c0_11, %c0_12, %c0_13] : memref<1x1x1x256xf32, #tpu.memory_space<vmem>>, vector<1x1x1x256xf32>
    %25 = vector.shape_cast %24 : vector<1x1x1x256xf32> to vector<1x256xf32>
    %26 = arith.addf %25, %23 : vector<1x256xf32>
    %c0_14 = arith.constant 0 : index
    %c0_15 = arith.constant 0 : index
    %c0_16 = arith.constant 0 : index
    %c0_17 = arith.constant 0 : index
    %27 = vector.load %arg5[%c0_14, %c0_15, %c0_16, %c0_17] : memref<1x1x1x256xf32, #tpu.memory_space<vmem>>, vector<1x1x1x256xf32>
    %28 = vector.shape_cast %27 : vector<1x1x1x256xf32> to vector<1x256xf32>
    %29 = vector.shape_cast %26 : vector<1x256xf32> to vector<1x1x1x256xf32>
    tpu.vector_store %arg5[%c0_14, %c0_15, %c0_16, %c0_17], %29 {strides = array<i32>} : memref<1x1x1x256xf32, #tpu.memory_space<vmem>>, vector<1x1x1x256xf32>,
    return
  }
  func.func @transform_0(%arg0: i32, %arg1: i32, %arg2: i32) -> (i32, i32, i32) {
    %c1_i32 = arith.constant 1 : i32
    %0 = arith.muli %arg1, %c1_i32 : i32
    %1 = arith.addi %0, %arg2 : i32
    %c0_i32 = arith.constant 0 : i32
    %c0_i32_0 = arith.constant 0 : i32
    return %arg0, %c0_i32, %1 : i32, i32, i32
  }
  func.func @transform_1(%arg0: i32, %arg1: i32, %arg2: i32) -> (i32, i32, i32) {
    %c1_i32 = arith.constant 1 : i32
    %0 = arith.muli %arg1, %c1_i32 : i32
    %1 = arith.addi %0, %arg2 : i32
    %c0_i32 = arith.constant 0 : i32
    %c0_i32_0 = arith.constant 0 : i32
    return %arg0, %c0_i32, %1 : i32, i32, i32
  }
  func.func @transform_2(%arg0: i32, %arg1: i32, %arg2: i32) -> (i32, i32, i32, i32) {
    %c0_i32 = arith.constant 0 : i32
    %c0_i32_0 = arith.constant 0 : i32
    %c0_i32_1 = arith.constant 0 : i32
    return %arg0, %arg1, %c0_i32, %c0_i32_0 : i32, i32, i32, i32
  }
}

</mosaic_0001>

<llo_original>
// kernel: tpu_custom_call.1
$region0: #{tpu_custom_call.1}
  #allocation0 [shape = 'u32[]', space=smem, size = 0x4, offset = 0x4, fixed_abs, tag = 'smem constant byte address 0x4 - core index']
  #allocation1 [shape = 'u32[72,128]{1,0:T(1,128)}', space=vmem, size = 0x9000, scoped, tag = 'internal scratch']
  %s0 = inlined_call_operand.hbm [shape: f32[2,4,256], index: 0, kind: input, shape index: {}]
  %s1 = inlined_call_operand.hbm [shape: f32[2,4,256], index: 1, kind: input, shape index: {}]
  %s2 = inlined_call_operand.hbm [shape: f32[2,1,1,256], index: 2, kind: output, shape index: {}]
  %s3 = sld [smem:[#allocation0]]
  $region53: #{tpu_custom_call.1} parent=0
    _
  %s5 = ssub.s32 1, %s3
  %s6 = scalar_select 0, %s5, %s3
  $region1: #{tpu_custom_call.1} parent=0
    #allocation2 [shape = 'u8[8192]{0}', space=vmem, size = 0x2000, scoped, tag = 'input window, operand 0']
    #allocation3 [shape = 's32[2]{0}', space=sflag, size = 0x8, scoped, tag = 'scoped memory for tpu_custom_call.1']
    #allocation4 [shape = 's32[2]{0}', space=sflag, size = 0x8, scoped, tag = 'scoped memory for tpu_custom_call.1']
    #allocation5 [shape = 'u8[8192]{0}', space=vmem, size = 0x2000, scoped, tag = 'input window, operand 1']
    #allocation6 [shape = 's32[2]{0}', space=sflag, size = 0x8, scoped, tag = 'scoped memory for tpu_custom_call.1']
    #allocation7 [shape = 'u8[2048]{0}', space=vmem, size = 0x800, scoped, tag = 'output window, operand 0']
    %7 = vsyncpa [#allocation3], 0
    %s8 = scalar_lea.sflag [#allocation3], 1
    %9 = vsyncpa %s8, 0
    %10 = vsyncpa [#allocation6], 0
    %s11 = scalar_lea.sflag [#allocation6], 1
    %12 = vsyncpa %s11, 0
    %13 = vsyncpa [#allocation4], 0
    %s14 = scalar_lea.sflag [#allocation4], 1
    %15 = vsyncpa %s14, 0
    loop: start=0, step=1, limit=4
    $region2: #{tpu_custom_call.1} parent=1 // loop_pre_header
      _
    $region3: #{tpu_custom_call.1} parent=1 // loop_header
      %s17 = sphi 0, %s21
      %p18 = scmp.ge.s32.totalorder %s17, 4
      %s24 = sphi 0, %s43
      %s25 = sphi 0, %s39
      %s26 = sphi 0, %s35
      %s27 = sphi 0, %s24
      %s28 = sphi 0, %s25
      %s29 = sphi 0, %s26
      %s30 = sphi 0, %s27
      %s31 = sphi 0, %s28
      %s32 = sphi 0, %s29
      %s50 = sphi 0, %s52
      %s53 = sphi 0, %s50
      %s54 = sphi 0, %s53
      %s70 = sphi 0, %s54
      %s80 = sphi 0, %s82
      %s83 = sphi 0, %s80
      %s84 = sphi 0, %s83
      %s100 = sphi 0, %s84
      %s108 = sphi 0, %s110
      %s111 = sphi 0, %s108
      %s112 = sphi 0, %s111
      %s128 = sphi 0, %s112
    $region4: #{tpu_custom_call.1} parent=1 // loop_header_branch
      %20 = sbr.rel (%p18) target = $region8
    $region5: #{tpu_custom_call.1} parent=1 // loop_body
      %s22 = ssub.s32 %s17, 1
      %s23 = ssub.s32 %s17, 2
      %s33 = sadd.s32 1, %s26
      %p34 = scmp.ge.s32.totalorder %s33, 1
      %s35 = scalar_select %p34, 0, %s33
      %s36 = sadd.s32 1, %s25
      %s37 = scalar_select %p34, %s36, %s25
      %p38 = scmp.ge.s32.totalorder %s37, 1
      %s39 = scalar_select %p38, 0, %s37
      %s40 = sadd.s32 1, %s24
      %s41 = scalar_select %p38, %s40, %s24
      %p42 = scmp.ge.s32.totalorder %s41, 2
      %s43 = scalar_select %p42, 0, %s41
      %s44 = sadd.s32 %s25, %s26
      %s45 = sadd.s32 %s39, %s35
      %s46 = ssub.s32 %s24, %s43
      %s47 = ssub.s32 %s44, %s45
      %s48 = sor.u32 %s46, %s47
      %p49 = scmp.eq.s32.totalorder %s48, 0
      %s51 = sadd.s32 %s50, 1
      %s52 = scalar_select %p49, %s50, %s51
      %p55 = pneg %p49
      %p56 = scmp.eq.s32.totalorder %s17, 1
      %p57 = por %p55, %p56
      %p58 = scmp.ne.s32.totalorder %s50, %s53
      %p59 = scmp.eq.s32.totalorder %s17, 0
      %p60 = por %p58, %p59
      %p61 = scmp.ne.s32.totalorder %s50, %s53
      %p62 = scmp.eq.s32.totalorder %s22, 1
      %p63 = por %p61, %p62
      %p64 = scmp.ne.s32.totalorder %s53, %s54
      %p65 = scmp.eq.s32.totalorder %s22, 0
      %p66 = por %p64, %p65
      %p67 = scmp.ne.s32.totalorder %s53, %s54
      %p68 = scmp.eq.s32.totalorder %s23, 1
      %p69 = por %p67, %p68
      %p71 = scmp.ne.s32.totalorder %s54, %s70
      %p72 = scmp.eq.s32.totalorder %s23, 0
      %p73 = por %p71, %p72
      %s74 = sadd.s32 %s25, %s26
      %s75 = sadd.s32 %s39, %s35
      %s76 = ssub.s32 %s24, %s43
      %s77 = ssub.s32 %s74, %s75
      %s78 = sor.u32 %s76, %s77
      %p79 = scmp.eq.s32.totalorder %s78, 0
      %s81 = sadd.s32 %s80, 1
      %s82 = scalar_select %p79, %s80, %s81
      %p85 = pneg %p79
      %p86 = scmp.eq.s32.totalorder %s17, 1
      %p87 = por %p85, %p86
      %p88 = scmp.ne.s32.totalorder %s80, %s83
      %p89 = scmp.eq.s32.totalorder %s17, 0
      %p90 = por %p88, %p89
      %p91 = scmp.ne.s32.totalorder %s80, %s83
      %p92 = scmp.eq.s32.totalorder %s22, 1
      %p93 = por %p91, %p92
      %p94 = scmp.ne.s32.totalorder %s83, %s84
      %p95 = scmp.eq.s32.totalorder %s22, 0
      %p96 = por %p94, %p95
      %p97 = scmp.ne.s32.totalorder %s83, %s84
      %p98 = scmp.eq.s32.totalorder %s23, 1
      %p99 = por %p97, %p98
      %p101 = scmp.ne.s32.totalorder %s84, %s100
      %p102 = scmp.eq.s32.totalorder %s23, 0
      %p103 = por %p101, %p102
      %s104 = ssub.s32 %s24, %s43
      %s105 = ssub.s32 %s25, %s39
      %s106 = sor.u32 %s104, %s105
      %p107 = scmp.eq.s32.totalorder %s106, 0
      %s109 = sadd.s32 %s108, 1
      %s110 = scalar_select %p107, %s108, %s109
      %p113 = pneg %p107
      %p114 = scmp.eq.s32.totalorder %s17, 1
      %p115 = por %p113, %p114
      %p116 = scmp.ne.s32.totalorder %s108, %s111
      %p117 = scmp.eq.s32.totalorder %s17, 0
      %p118 = por %p116, %p117
      %p119 = scmp.ne.s32.totalorder %s108, %s111
      %p120 = scmp.eq.s32.totalorder %s22, 1
      %p121 = por %p119, %p120
      %p122 = scmp.ne.s32.totalorder %s111, %s112
      %p123 = scmp.eq.s32.totalorder %s22, 0
      %p124 = por %p122, %p123
      %p125 = scmp.ne.s32.totalorder %s111, %s112
      %p126 = scmp.eq.s32.totalorder %s23, 1
      %p127 = por %p125, %p126
      %p129 = scmp.ne.s32.totalorder %s112, %s128
      %p130 = scmp.eq.s32.totalorder %s23, 0
      %p131 = por %p129, %p130
      %p132 = scmp.le.s32.totalorder 1, %s17
      %p133 = scmp.lt.s32.totalorder %s17, 3
      %p134 = pnand %p132, %p133
      %p135 = pneg %p134
      // Predicated region
      $region9: #{tpu_custom_call.1} parent=5 // pred_check
        _
      $region10: #{tpu_custom_call.1} parent=5 // pred_check_branch
        %137 = sbr.rel (%p134) target = $region12
      $region11: #{tpu_custom_call.1} parent=5 // pred_region
        %s138 = ssub.s32 %s17, 1
      $region12: #{tpu_custom_call.1} parent=5 // pred_fallthru
        _
      %p139 = scmp.lt.s32.totalorder %s17, 2
      // Predicated region
      $region13: #{tpu_custom_call.1} parent=5 // pred_check
        %p140 = pneg %p139
      $region14: #{tpu_custom_call.1} parent=5 // pred_check_branch
        %142 = sbr.rel (%p140) target = $region16
      $region15: #{tpu_custom_call.1} parent=5 // pred_region
        // Predicated region
        $region17: #{tpu_custom_call.1} parent=15 // pred_check
          %p143 = pneg %p60
        $region18: #{tpu_custom_call.1} parent=15 // pred_check_branch
          %145 = sbr.rel (%p143) target = $region20
        $region19: #{tpu_custom_call.1} parent=15 // pred_region
          %s146 = sand.u32 %s50, 1
          %s147 = scalar_lea.sflag [#allocation3], %s146
          %s148 = sand.u32 %s50, 1
          %s149 = smul.addr %s148, 8
          %s150 = scalar_lea.vmem [#allocation2], %s149
          %s151 = sadd.s32 %s25, %s26
          %s152 = smul.u32 2, %s151
          %154 = vsyncadd %s147, 0
          %s155 = smul.addr %s24, 2
          %s156 = sadd.s32 %s152, %s155
          %s157 = smul.addr %s156, 4
          %s158 = scalar_lea.hbm %s0, %s157
          %s160 = sshll.u32 %s158, 4
          %s161 = int_to_ptr.hbm [resolvable:$true] %s160
          %s162 = sshll.u32 %s150, 4
          %s163 = int_to_ptr.vmem [resolvable:$true] %s162
          %165 = dma.hbm_to_vmem [thread:$0]  %s161, 128, %s163, %s147
        $region20: #{tpu_custom_call.1} parent=15 // pred_fallthru
          _
        // Predicated region
        $region21: #{tpu_custom_call.1} parent=15 // pred_check
          %p166 = pneg %p90
        $region22: #{tpu_custom_call.1} parent=15 // pred_check_branch
          %168 = sbr.rel (%p166) target = $region24
        $region23: #{tpu_custom_call.1} parent=15 // pred_region
          %s169 = sand.u32 %s80, 1
          %s170 = scalar_lea.sflag [#allocation6], %s169
          %s171 = sand.u32 %s80, 1
          %s172 = smul.addr %s171, 8
          %s173 = scalar_lea.vmem [#allocation5], %s172
          %s174 = sadd.s32 %s25, %s26
          %s175 = smul.u32 2, %s174
          %177 = vsyncadd %s170, 0
          %s178 = smul.addr %s24, 2
          %s179 = sadd.s32 %s175, %s178
          %s180 = smul.addr %s179, 4
          %s181 = scalar_lea.hbm %s1, %s180
          %s183 = sshll.u32 %s181, 4
          %s184 = int_to_ptr.hbm [resolvable:$true] %s183
          %s185 = sshll.u32 %s173, 4
          %s186 = int_to_ptr.vmem [resolvable:$true] %s185
          %188 = dma.hbm_to_vmem [thread:$0]  %s184, 128, %s186, %s170
        $region24: #{tpu_custom_call.1} parent=15 // pred_fallthru
          _
      $region16: #{tpu_custom_call.1} parent=5 // pred_fallthru
        _
      %p189 = scmp.le.s32.totalorder 1, %s17
      %p190 = scmp.lt.s32.totalorder %s17, 3
      %p191 = pnand %p189, %p190
      %p192 = pneg %p191
      // Predicated region
      $region25: #{tpu_custom_call.1} parent=5 // pred_check
        _
      $region26: #{tpu_custom_call.1} parent=5 // pred_check_branch
        %194 = sbr.rel (%p191) target = $region28
      $region27: #{tpu_custom_call.1} parent=5 // pred_region
        %s195 = ssub.s32 %s17, 1
        %s196 = sand.u32 %s53, 1
        %s197 = scalar_lea.sflag [#allocation3], %s196
        %s198 = sand.u32 %s53, 1
        %s199 = smul.addr %s198, 8
        %s200 = scalar_lea.vmem [#allocation2], %s199
        // Predicated region
        $region29: #{tpu_custom_call.1} parent=27 // pred_check
          %p201 = pneg %p66
        $region30: #{tpu_custom_call.1} parent=27 // pred_check_branch
          %203 = sbr.rel (%p201) target = $region32
        $region31: #{tpu_custom_call.1} parent=27 // pred_region
          %205 = dma.done %s197, 128
        $region32: #{tpu_custom_call.1} parent=27 // pred_fallthru
          _
        %s206 = sand.u32 %s83, 1
        %s207 = scalar_lea.sflag [#allocation6], %s206
        %s208 = sand.u32 %s83, 1
        %s209 = smul.addr %s208, 8
        %s210 = scalar_lea.vmem [#allocation5], %s209
        // Predicated region
        $region33: #{tpu_custom_call.1} parent=27 // pred_check
          %p211 = pneg %p96
        $region34: #{tpu_custom_call.1} parent=27 // pred_check_branch
          %213 = sbr.rel (%p211) target = $region36
        $region35: #{tpu_custom_call.1} parent=27 // pred_region
          %215 = dma.done %s207, 128
        $region36: #{tpu_custom_call.1} parent=27 // pred_fallthru
          _
        %s216 = sand.u32 %s53, 1
        %s217 = scalar_lea.sflag [#allocation3], %s216
        %s218 = sand.u32 %s53, 1
        %s219 = smul.addr %s218, 8
        %s220 = scalar_lea.vmem [#allocation2], %s219
        %p221 = pneg %p66
        %p222 = pneg %p63
        %s223 = sand.u32 %s83, 1
        %s224 = scalar_lea.sflag [#allocation6], %s223
        %s225 = sand.u32 %s83, 1
        %s226 = smul.addr %s225, 8
        %s227 = scalar_lea.vmem [#allocation5], %s226
        %p228 = pneg %p96
        %p229 = pneg %p93
        %p230 = pneg %p124
        %p231 = pneg %p121
        %s232 = sand.u32 %s111, 1
        %s233 = scalar_lea.sflag [#allocation4], %s232
        %s234 = sand.u32 %s111, 1
        %s235 = smul.addr %s234, 2
        %s236 = scalar_lea.vmem [#allocation7], %s235
        %s237 = sadd.s32 %s28, %s29
        %s238 = smul.u32 2, %s237
        %s239 = sadd.s32 %s28, %s29
        %s240 = smul.u32 2, %s239
        %p241 = scmp.eq.s32.totalorder %s29, 0
        // Predicated region
        $region37: #{tpu_custom_call.1} parent=27 // pred_check
          %p242 = pneg %p241
        $region38: #{tpu_custom_call.1} parent=27 // pred_check_branch
          %244 = sbr.rel (%p242) target = $region40
        $region39: #{tpu_custom_call.1} parent=27 // pred_region
          %v245 = vlaneseq
          %vm246 = vcmp.ge.s32.totalorder %v245, 0
          %vm247 = vcmp.lt.s32.totalorder %v245, 256
          %vm248 = vmand %vm246, %vm247
          %249 = vst.msk [vmem:[%s236] sm:$0x3] %vm248, 0.0
        $region40: #{tpu_custom_call.1} parent=27 // pred_fallthru
          _
        %v250 = vld [vmem:[%s200] sm:$0xff]
        %v251 = vld [vmem:[%s210] sm:$0xff]
        %v252 = vmul.f32 %v250, %v251
        %254 = vst [vmem:[#allocation1] ss:$2 sm:$0xff] %v252
        %v255 = vld.sshfl [vmem:[#allocation1] sm:$0xff pattern:$0x75316420]
        %v256 = vld.sshfl [vmem:[#allocation1 + $0x8] sm:$0xff pattern:$0x75316420]
        %vm259 = vcmask 1043456
        %v260 = vsel %vm259, %v255, 0.0
        %v261 = vrot.slane %v260, 4
        %v262 = vadd.f32 %v260, %v261
        %v263 = vrot.slane %v262, 2
        %v264 = vadd.f32 %v262, %v263
        %v265 = vrot.slane %v264, 1
        %v266 = vadd.f32 %v264, %v265
        %v267 = vsel %vm259, %v256, 0.0
        %v268 = vrot.slane %v267, 4
        %v269 = vadd.f32 %v267, %v268
        %v270 = vrot.slane %v269, 2
        %v271 = vadd.f32 %v269, %v270
        %v272 = vrot.slane %v271, 1
        %v273 = vadd.f32 %v271, %v272
        %v274 = vmul.f32 %v250, %v250
        %276 = vst [vmem:[#allocation1] ss:$2 sm:$0xff] %v274
        %v277 = vld.sshfl [vmem:[#allocation1] sm:$0xff pattern:$0x75316420]
        %v278 = vld.sshfl [vmem:[#allocation1 + $0x8] sm:$0xff pattern:$0x75316420]
        %v281 = vsel %vm259, %v277, 0.0
        %v282 = vrot.slane %v281, 4
        %v283 = vadd.f32 %v281, %v282
        %v284 = vrot.slane %v283, 2
        %v285 = vadd.f32 %v283, %v284
        %v286 = vrot.slane %v285, 1
        %v287 = vadd.f32 %v285, %v286
        %v288 = vsel %vm259, %v278, 0.0
        %v289 = vrot.slane %v288, 4
        %v290 = vadd.f32 %v288, %v289
        %v291 = vrot.slane %v290, 2
        %v292 = vadd.f32 %v290, %v291
        %v293 = vrot.slane %v292, 1
        %v294 = vadd.f32 %v292, %v293
        %v295 = vrsqrt.pop %v287
        %v296 = vmul.f32 %v295, %v287
        %v297 = vmul.f32 %v296, %v295
        %v298 = vmul.f32 0.5, %v297
        %v299 = vsub.f32 1.5, %v298
        %v300 = vmul.f32 %v295, %v299
        %v301 = vmul.f32 %v287, %v300
        %vm302 = vcmp.eq.f32.partialorder %v287, inf
        %v303 = vsel %vm302, %v287, %v301
        %vm304 = vcmp.eq.f32.partialorder %v287, 0.0
        %v305 = vand.u32 %v287, 2147483648
        %v306 = vsel %vm304, %v305, %v303
        %v307 = vrsqrt.pop %v294
        %v308 = vmul.f32 %v307, %v294
        %v309 = vmul.f32 %v308, %v307
        %v310 = vmul.f32 0.5, %v309
        %v311 = vsub.f32 1.5, %v310
        %v312 = vmul.f32 %v307, %v311
        %v313 = vmul.f32 %v294, %v312
        %vm314 = vcmp.eq.f32.partialorder %v294, inf
        %v315 = vsel %vm314, %v294, %v313
        %vm316 = vcmp.eq.f32.partialorder %v294, 0.0
        %v317 = vand.u32 %v294, 2147483648
        %v318 = vsel %vm316, %v317, %v315
        %v319 = vmul.f32 %v251, %v251
        %321 = vst [vmem:[#allocation1] ss:$2 sm:$0xff] %v319
        %v322 = vld.sshfl [vmem:[#allocation1] sm:$0xff pattern:$0x75316420]
        %v323 = vld.sshfl [vmem:[#allocation1 + $0x8] sm:$0xff pattern:$0x75316420]
        %v326 = vsel %vm259, %v322, 0.0
        %v327 = vrot.slane %v326, 4
        %v328 = vadd.f32 %v326, %v327
        %v329 = vrot.slane %v328, 2
        %v330 = vadd.f32 %v328, %v329
        %v331 = vrot.slane %v330, 1
        %v332 = vadd.f32 %v330, %v331
        %v333 = vsel %vm259, %v323, 0.0
        %v334 = vrot.slane %v333, 4
        %v335 = vadd.f32 %v333, %v334
        %v336 = vrot.slane %v335, 2
        %v337 = vadd.f32 %v335, %v336
        %v338 = vrot.slane %v337, 1
        %v339 = vadd.f32 %v337, %v338
        %v340 = vrsqrt.pop %v332
        %v341 = vmul.f32 %v340, %v332
        %v342 = vmul.f32 %v341, %v340
        %v343 = vmul.f32 0.5, %v342
        %v344 = vsub.f32 1.5, %v343
        %v345 = vmul.f32 %v340, %v344
        %v346 = vmul.f32 %v332, %v345
        %vm347 = vcmp.eq.f32.partialorder %v332, inf
        %v348 = vsel %vm347, %v332, %v346
        %vm349 = vcmp.eq.f32.partialorder %v332, 0.0
        %v350 = vand.u32 %v332, 2147483648
        %v351 = vsel %vm349, %v350, %v348
        %v352 = vrsqrt.pop %v339
        %v353 = vmul.f32 %v352, %v339
        %v354 = vmul.f32 %v353, %v352
        %v355 = vmul.f32 0.5, %v354
        %v356 = vsub.f32 1.5, %v355
        %v357 = vmul.f32 %v352, %v356
        %v358 = vmul.f32 %v339, %v357
        %vm359 = vcmp.eq.f32.partialorder %v339, inf
        %v360 = vsel %vm359, %v339, %v358
        %vm361 = vcmp.eq.f32.partialorder %v339, 0.0
        %v362 = vand.u32 %v339, 2147483648
        %v363 = vsel %vm361, %v362, %v360
        %v364 = vmul.f32 %v306, %v351
        %v365 = vmul.f32 %v318, %v363
        %v366 = vadd.f32 %v364, 1e-05
        %v367 = vadd.f32 %v365, 1e-05
        %v368 = vrcp.pop %v366
        %v369 = vmul.f32 %v366, %v368
        %v370 = vsub.f32 1.0, %v369
        %v371 = vmul.f32 %v368, %v370
        %v372 = vadd.f32 %v368, %v371
        %vm373 = vweird.f32 %v366
        %vm374 = vweird.f32 %v368
        %vm375 = vmor %vm373, %vm374
        %v376 = vsel %vm375, %v368, %v372
        %v377 = vand.u32 2147483647, %v366
        %vm378 = vcmp.eq.f32.partialorder %v377, 8.507059e+37
        %v379 = vand.u32 %v366, 2147483648
        %v380 = vor.u32 1.1754944e-38, %v379
        %v381 = vsel %vm378, %v380, %v376
        %v382 = vmul.f32 %v266, %v381
        %v383 = vrcp.pop %v367
        %v384 = vmul.f32 %v367, %v383
        %v385 = vsub.f32 1.0, %v384
        %v386 = vmul.f32 %v383, %v385
        %v387 = vadd.f32 %v383, %v386
        %vm388 = vweird.f32 %v367
        %vm389 = vweird.f32 %v383
        %vm390 = vmor %vm388, %vm389
        %v391 = vsel %vm390, %v383, %v387
        %v392 = vand.u32 2147483647, %v367
        %vm393 = vcmp.eq.f32.partialorder %v392, 8.507059e+37
        %v394 = vand.u32 %v367, 2147483648
        %v395 = vor.u32 1.1754944e-38, %v394
        %v396 = vsel %vm393, %v395, %v391
        %v397 = vmul.f32 %v273, %v396
        %v398 = vsub.f32 1.0, %v382
        %v399 = vsub.f32 1.0, %v397
        %v400 = vld [vmem:[%s236] sm:$0x3]
        %v403 = vrot.slane %v399, 7
        %vm404 = vcmask 1040384
        %v405 = vsel %vm404, %v398, %v403
        %v407 = vadd.f32 %v400, %v405
        %v408 = vlaneseq
        %vm409 = vcmp.ge.s32.totalorder %v408, 0
        %vm410 = vcmp.lt.s32.totalorder %v408, 256
        %vm411 = vmand %vm409, %vm410
        %412 = vst.msk [vmem:[%s236] sm:$0x3] %vm411, %v407
        %s413 = sand.u32 %s111, 1
        %s414 = scalar_lea.sflag [#allocation4], %s413
        %s415 = sand.u32 %s111, 1
        %s416 = smul.addr %s415, 2
        %s417 = scalar_lea.vmem [#allocation7], %s416
        // Predicated region
        $region41: #{tpu_custom_call.1} parent=27 // pred_check
          %p418 = pneg %p121
        $region42: #{tpu_custom_call.1} parent=27 // pred_check_branch
          %420 = sbr.rel (%p418) target = $region44
        $region43: #{tpu_custom_call.1} parent=27 // pred_region
          %422 = vsyncadd %s414, 0
          %s423 = smul.addr %s28, 2
          %s424 = smul.addr %s27, 2
          %s425 = sadd.s32 %s423, %s424
          %s426 = scalar_lea.hbm %s2, %s425
          %s428 = sshll.u32 %s417, 4
          %s429 = int_to_ptr.vmem [resolvable:$true] %s428
          %s430 = sshll.u32 %s426, 4
          %s431 = int_to_ptr.hbm [resolvable:$true] %s430
          %433 = dma.vmem_to_hbm [thread:$0]  %s429, 32, %s431, %s414
        $region44: #{tpu_custom_call.1} parent=27 // pred_fallthru
          _
      $region28: #{tpu_custom_call.1} parent=5 // pred_fallthru
        _
      %p434 = scmp.le.s32.totalorder 2, %s17
      // Predicated region
      $region45: #{tpu_custom_call.1} parent=5 // pred_check
        %p435 = pneg %p434
      $region46: #{tpu_custom_call.1} parent=5 // pred_check_branch
        %437 = sbr.rel (%p435) target = $region48
      $region47: #{tpu_custom_call.1} parent=5 // pred_region
        %s438 = ssub.s32 %s17, 2
        // Predicated region
        $region49: #{tpu_custom_call.1} parent=47 // pred_check
          %p439 = pneg %p127
        $region50: #{tpu_custom_call.1} parent=47 // pred_check_branch
          %441 = sbr.rel (%p439) target = $region52
        $region51: #{tpu_custom_call.1} parent=47 // pred_region
          %s442 = sand.u32 %s112, 1
          %s443 = scalar_lea.sflag [#allocation4], %s442
          %s444 = sand.u32 %s112, 1
          %s445 = smul.addr %s444, 2
          %s446 = scalar_lea.vmem [#allocation7], %s445
          %448 = dma.done %s443, 32
        $region52: #{tpu_custom_call.1} parent=47 // pred_fallthru
          _
      $region48: #{tpu_custom_call.1} parent=5 // pred_fallthru
        _
    $region6: #{tpu_custom_call.1} parent=1 // loop_footer
      %s21 = sadd.s32 1, %s17
    $region7: #{tpu_custom_call.1} parent=1 // loop_footer_branch
      %16 = sbr.rel target = $region3
    $region8: #{tpu_custom_call.1} parent=1 // loop_exit
      _
    %449 = vsyncpa [#allocation3], 1
    %s450 = scalar_lea.sflag [#allocation3], 1
    %451 = vsyncpa %s450, 1
    %452 = vsyncpa [#allocation6], 1
    %s453 = scalar_lea.sflag [#allocation6], 1
    %454 = vsyncpa %s453, 1
    %455 = vsyncpa [#allocation4], 1
    %s456 = scalar_lea.sflag [#allocation4], 1
    %457 = vsyncpa %s456, 1

</llo_original>
